<compile_context>
chip_gen: v7x
topology: tpu7x:2x2x1
jax: 0.10.0
libtpu: 0.0.40
codegen_flags: <defaults>
</compile_context>

<pallas_src>
import math

import jax
import jax.numpy as jnp
from jax.experimental import pallas as pl
from jax.experimental.pallas import tpu as pltpu


# ----------------------------- kernel bodies -------------------------------
# Blocks arrive rank-matched; size-1 dims of pe / stillness broadcast via jnp
# inside the tile.  Each body is a single VPU add (or two) per vreg.

def _pe_add_kernel(x_ref, pe_ref, o_ref):
    o_ref[...] = x_ref[...] + pe_ref[...]


def _pe_add_stillness_kernel(x_ref, pe_ref, s_ref, o_ref):
    o_ref[...] = x_ref[...] + pe_ref[...] + s_ref[...]


# --------------------------- parameter setup -------------------------------

def make_sinusoidal_pe(d_model: int, max_len: int = 5000, dtype=jnp.float32):
    """Deterministic buffer setup, identical to the torch __init__.

    Pass dtype=<model dtype> so the per-call cast is hoisted off the hot path.
    (torch keeps an fp32 buffer; a bf16 table differs in low mantissa bits.)
    """
    position = jnp.arange(0, max_len, dtype=jnp.float32)[:, None]           # (L, 1)
    div_term = jnp.exp(
        jnp.arange(0, d_model, 2, dtype=jnp.float32) * (-math.log(10000.0) / d_model)
    )                                                                        # (ceil(d/2),)
    angles = position * div_term                                             # (L, ceil(d/2))
    pe = jnp.zeros((max_len, d_model), dtype=jnp.float32)
    pe = pe.at[:, 0::2].set(jnp.sin(angles))
    pe = pe.at[:, 1::2].set(jnp.cos(angles)[:, : d_model // 2])
    return pe.astype(dtype)                                                  # (L, d_model)


# ----------------------------- sizing helpers -------------------------------

_MIN_PALLAS_ELEMENTS = 1 << 16     # below ~256 KiB the fused XLA add wins.


def _vmem_capacity_bytes() -> int:
    try:
        cap = getattr(pltpu.get_tpu_info(), "vmem_capacity_bytes", None)
        if cap:
            return int(cap)
    except Exception:                # query unavailable (e.g. interpret mode)
        pass
    return 64 << 20                  # conservative: v7x-class VMEM


def _tile_target_bytes(vmem_cap: int) -> int:
    # Per-stream, per-buffer tile target: big enough to amortize the ~0.35us
    # per-grid-step overhead, small enough that 2 buffers x 4 streams stays
    # comfortably inside VMEM on every generation (limit is set explicitly).
    if vmem_cap >= (96 << 20):       # v5e / v6e class (128 MiB physical VMEM)
        return 2 << 20
    return 4 << 20                   # v7x class: 64 MiB VMEM but 3.2 TB/s HBM


def _sublane_pack(itemsize: int) -> int:
    # Rows per packed sublane group: 8 for f32, 16 for bf16, 32 for int8/fp8.
    return max(8, 32 // max(1, itemsize))


def _choose_seq_tile(S: int, D: int, itemsize: int, target_bytes: int) -> int:
    pack = _sublane_pack(itemsize)
    rows = max(pack, target_bytes // max(1, D * itemsize))
    rows = (rows // pack) * pack                 # dtype-aware sublane alignment
    return S if rows >= S else rows


# ------------------------------ core launcher -------------------------------

def _pe_add_3d(x, pe3, stillness, *, seq_tile=None):
    """x: (B, S, D); pe3: (1, S, D); stillness: None or (sB, sS, sD) where each
    dim is either 1 or the full extent.  Returns x + pe3 (+ stillness)."""
    B, S, D = x.shape
    itemsize = jnp.dtype(x.dtype).itemsize
    slab_bytes = S * D * itemsize
    vmem_cap = _vmem_capacity_bytes()
    target = _tile_target_bytes(vmem_cap)

    have_still = stillness is not None
    if have_still:
        sB, sS, sD = stillness.shape
    n_streams = 4 if have_still else 3           # x, pe, (stillness,), out

    if seq_tile is None and slab_bytes <= target:
        # ---- batch-blocked path: whole (S, D) slab per step -----------------
        # pe (and a batch-broadcast stillness) use a constant index_map, so
        # they are DMA'd from HBM exactly once and stay resident in VMEM.
        bT = max(1, min(B, target // max(1, slab_bytes)))
        if bT >= B and B >= 2 and B * slab_bytes >= (4 << 20):
            bT = pl.cdiv(B, 2)       # keep 2 grid steps so both v7x TCs stream
        grid = (pl.cdiv(B, bT),)
        x_spec = pl.BlockSpec((bT, S, D), lambda b: (b, 0, 0))
        pe_spec = pl.BlockSpec((1, S, D), lambda b: (0, 0, 0))   # fetched once
        out_spec = pl.BlockSpec((bT, S, D), lambda b: (b, 0, 0))
        in_specs = [x_spec, pe_spec]
        args = [x, pe3]
        if have_still:
            s_block = (bT if sB == B else 1,
                       S if sS == S else 1,
                       D if sD == D else 1)
            s_spec = pl.BlockSpec(s_block,
                                  lambda b: (b if sB == B else 0, 0, 0))
            in_specs.append(s_spec)
            args.append(stillness)
        dims = ("parallel",)
        tile_bytes = bT * slab_bytes
    else:
        # ---- seq-tiled path: grid = (seq tiles, B), batch INNERMOST ---------
        # pe's block index (0, s, 0) is constant across consecutive inner batch
        # steps, so Pallas skips the re-copy: pe is read once, not B times.
        tS = seq_tile if seq_tile is not None else _choose_seq_tile(
            S, D, itemsize, target)
        tS = min(tS, S)
        grid = (pl.cdiv(S, tS), B)
        x_spec = pl.BlockSpec((1, tS, D), lambda s, b: (b, s, 0))
        pe_spec = pl.BlockSpec((1, tS, D), lambda s, b: (0, s, 0))
        out_spec = pl.BlockSpec((1, tS, D), lambda s, b: (b, s, 0))
        in_specs = [x_spec, pe_spec]
        args = [x, pe3]
        if have_still:
            s_block = (1, tS if sS == S else 1, D if sD == D else 1)
            s_spec = pl.BlockSpec(
                s_block,
                lambda s, b: (b if sB == B else 0, s if sS == S else 0, 0))
            in_specs.append(s_spec)
            args.append(stillness)
        dims = ("parallel", "parallel")
        tile_bytes = tS * D * itemsize

    # Cover 2 buffers x all streams with headroom; never below the v5e-safe
    # floor, never above physical VMEM.
    vmem_limit = int(n_streams * 2 * tile_bytes * 1.25) + (4 << 20)
    vmem_limit = max(vmem_limit, 32 << 20)
    vmem_limit = min(vmem_limit, max(vmem_cap - (8 << 20), 32 << 20))

    cparams = pltpu.CompilerParams(dimension_semantics=dims,
                                   vmem_limit_bytes=vmem_limit)

    bytes_accessed = (2 * x.size + pe3.size
                      + (stillness.size if have_still else 0)) * itemsize
    cost = pl.CostEstimate(flops=x.size * (2 if have_still else 1),
                           transcendentals=0,
                           bytes_accessed=bytes_accessed)

    kernel = _pe_add_stillness_kernel if have_still else _pe_add_kernel
    return pl.pallas_call(
        kernel,
        out_shape=jax.ShapeDtypeStruct((B, S, D), x.dtype),
        grid=grid, in_specs=in_specs, out_specs=out_spec,
        compiler_params=cparams, cost_estimate=cost,
    )(*args)


# ------------------------------- forward ------------------------------------

def stillness_positional_encoding(x, pe_full, stillness=None, *,
                                  seq_tile=None, force_pallas=False):
    """out = x + pe_full[:S] (+ stillness);  x: (B, S, D), pe_full: (max_len, D)."""
    B, S, D = x.shape
    pe = pe_full[:S, :]
    if pe.dtype != x.dtype:
        # Hoistable: build pe_full via make_sinusoidal_pe(dtype=x.dtype).
        pe = pe.astype(x.dtype)

    sB = sS = sD = None
    if stillness is not None:
        stillness = jnp.asarray(stillness, dtype=x.dtype)
        assert stillness.ndim <= 3, "stillness must broadcast against (B, S, D)"
        if stillness.ndim < 3:        # rank-normalize (metadata only)
            stillness = jnp.reshape(
                stillness, (1,) * (3 - stillness.ndim) + stillness.shape)
        sB, sS, sD = stillness.shape
        assert sB in (1, B) and sS in (1, S) and sD in (1, D), \
            "stillness must broadcast against (B, S, D)"

    # Tiny-shape fast path: let XLA fuse the broadcast-add.
    if not force_pallas and x.size < _MIN_PALLAS_ELEMENTS:
        out = x + pe[None, :, :]
        return out if stillness is None else out + stillness

    # Lane-dense re-layout: when D is not a multiple of 128, collapse (S, D)
    # to (P, 128) rows (metadata-only reshape, same row-major bytes) so output
    # stores are full-width vst instead of masked vst.msk and sublanes come
    # from the row axis instead of a possibly tiny batch dim.
    if (D % 128 != 0 and (S * D) % 128 == 0 and seq_tile is None
            and (stillness is None or (sS, sD) == (S, D))):
        L = 128
        P = (S * D) // L
        # TODO(synk): if P < 8 the row axis under-fills the vreg sublanes; such
        # slabs are tiny and the kernel stays HBM-bound, but a (B*P, L) layout
        # with a modular pe index_map would remove the residual padding.
        x3 = x.reshape(B, P, L)
        pe3 = pe.reshape(1, P, L)
        s3 = None if stillness is None else stillness.reshape(sB, P, L)
        out = _pe_add_3d(x3, pe3, s3)
        return out.reshape(B, S, D)

    # General 3D path (lane-masked stores only in the residual case where
    # D % 128 != 0 and the re-layout above is not applicable, e.g. a
    # partially-broadcast stillness).
    # TODO(synk): pad D to the next multiple of 128 for that residual case.
    return _pe_add_3d(x, pe.reshape(1, S, D), stillness, seq_tile=seq_tile)


# --------------------------------- demo --------------------------------------

if __name__ == "__main__":
    key = jax.random.PRNGKey(0)
    k1, k2, k3, k4 = jax.random.split(key, 4)

    # Test 1: module-sized shapes (D=32 < 128) -> lane-dense (B, P, 128)
    # re-layout + batch-blocked path (pe fetched exactly once).
    B, S, D = 2, 8, 32
    MAX_LEN = 64
    x = jax.random.normal(k1, (B, S, D), dtype=jnp.float32)
    pe_full = make_sinusoidal_pe(D, MAX_LEN, dtype=jnp.float32)

    out0 = jax.block_until_ready(
        stillness_positional_encoding(x, pe_full, None, force_pallas=True))
    ref0 = x + pe_full[None, :S, :]
    assert jnp.allclose(out0, ref0, atol=1e-6), "mismatch (no stillness)"

    stillness = jax.random.normal(k2, (1, S, D), dtype=jnp.float32)   # batch-bcast
    out1 = jax.block_until_ready(
        stillness_positional_encoding(x, pe_full, stillness, force_pallas=True))
    ref1 = x + pe_full[None, :S, :] + stillness
    assert jnp.allclose(out1, ref1, atol=1e-6), "mismatch (with stillness)"

    # Test 2: seq-tiled path (explicit seq_tile) with grid = (seq tiles, B),
    # batch innermost so pe is not re-DMA'd per batch; partial last seq tile;
    # seq-broadcast stillness handled purely through its index_map.
    B2, S2, D2 = 2, 20, 128
    pe_full2 = make_sinusoidal_pe(D2, 64, dtype=jnp.float32)
    x2 = jax.random.normal(k3, (B2, S2, D2), dtype=jnp.float32)
    still2 = jax.random.normal(k4, (B2, 1, D2), dtype=jnp.float32)

    out2 = jax.block_until_ready(
        stillness_positional_encoding(x2, pe_full2, still2,
                                      seq_tile=8, force_pallas=True))
    ref2 = x2 + pe_full2[None, :S2, :] + still2
    assert jnp.allclose(out2, ref2, atol=1e-6), "mismatch (seq-tiled, stillness bcast)"

    # Test 3: batch-blocked path with D a multiple of 128 (no re-layout),
    # whole (S, D) slab per step, pe resident with a constant index_map.
    out3 = jax.block_until_ready(
        stillness_positional_encoding(x2, pe_full2, None, force_pallas=True))
    ref3 = x2 + pe_full2[None, :S2, :]
    assert jnp.allclose(out3, ref3, atol=1e-6), "mismatch (batch-blocked)"

    print("KERNEL_OK")
</pallas_src>

<mosaic_0001>
module attributes {stable_mosaic.version = 11 : i64} {
  func.func @_pe_add_kernel(%arg0: i32, %arg1: memref<2x2x128xf32, #tpu.memory_space<vmem>>, %arg2: memref<1x2x128xf32, #tpu.memory_space<vmem>>, %arg3: memref<2x2x128xf32, #tpu.memory_space<vmem>>) attributes {dimension_semantics = [#tpu.dimension_semantics<parallel>], iteration_bounds = array<i64: 1>, scalar_prefetch = 0 : i64, scratch_operands = 0 : i64, tpu.core_type = #tpu.core_type<tc>, window_params = [{transform_indices = @transform_0, window_bounds = array<i64: 2, 2, 128>}, {pipeline_mode = #tpu.pipeline_mode<synchronous>, transform_indices = @transform_1, window_bounds = array<i64: 1, 2, 128>}, {transform_indices = @transform_2, window_bounds = array<i64: 2, 2, 128>}]} {
    %c0 = arith.constant 0 : index
    %c0_0 = arith.constant 0 : index
    %c0_1 = arith.constant 0 : index
    %0 = vector.load %arg1[%c0, %c0_0, %c0_1] : memref<2x2x128xf32, #tpu.memory_space<vmem>>, vector<2x2x128xf32>
    %c0_2 = arith.constant 0 : index
    %c0_3 = arith.constant 0 : index
    %c0_4 = arith.constant 0 : index
    %1 = vector.load %arg2[%c0_2, %c0_3, %c0_4] : memref<1x2x128xf32, #tpu.memory_space<vmem>>, vector<1x2x128xf32>
    %2 = vector.broadcast %1 : vector<1x2x128xf32> to vector<2x2x128xf32>
    %3 = arith.addf %0, %2 : vector<2x2x128xf32>
    %c0_5 = arith.constant 0 : index
    %c0_6 = arith.constant 0 : index
    %c0_7 = arith.constant 0 : index
    %4 = vector.load %arg3[%c0_5, %c0_6, %c0_7] : memref<2x2x128xf32, #tpu.memory_space<vmem>>, vector<2x2x128xf32>
    tpu.vector_store %arg3[%c0_5, %c0_6, %c0_7], %3 {strides = array<i32>} : memref<2x2x128xf32, #tpu.memory_space<vmem>>, vector<2x2x128xf32>,
    return
  }
  func.func @transform_0(%arg0: i32) -> (i32, i32, i32) {
    %c0_i32 = arith.constant 0 : i32
    %c0_i32_0 = arith.constant 0 : i32
    %c0_i32_1 = arith.constant 0 : i32
    return %arg0, %c0_i32, %c0_i32_0 : i32, i32, i32
  }
  func.func @transform_1(%arg0: i32) -> (i32, i32, i32) {
    %c0_i32 = arith.constant 0 : i32
    %c0_i32_0 = arith.constant 0 : i32
    %c0_i32_1 = arith.constant 0 : i32
    %c0_i32_2 = arith.constant 0 : i32
    return %c0_i32, %c0_i32_0, %c0_i32_1 : i32, i32, i32
  }
  func.func @transform_2(%arg0: i32) -> (i32, i32, i32) {
    %c0_i32 = arith.constant 0 : i32
    %c0_i32_0 = arith.constant 0 : i32
    %c0_i32_1 = arith.constant 0 : i32
    return %arg0, %c0_i32, %c0_i32_0 : i32, i32, i32
  }
}

</mosaic_0001>

<llo_original>
// kernel: tpu_custom_call.1
$region0: #{tpu_custom_call.1}
  #allocation0 [shape = 'u32[]', space=smem, size = 0x4, offset = 0x4, fixed_abs, tag = 'smem constant byte address 0x4 - core index']
  #allocation1 [shape = 'u32[144,128]{1,0:T(1,128)}', space=vmem, size = 0x12000, scoped, tag = 'internal scratch']
  %s0 = inlined_call_operand.hbm [shape: f32[2,2,128], index: 0, kind: input, shape index: {}]
  %s1 = inlined_call_operand.vmem [shape: f32[1,2,128], index: 1, kind: input, shape index: {}]
  %s2 = inlined_call_operand.hbm [shape: f32[2,2,128], index: 2, kind: output, shape index: {}]
  %s3 = sld [smem:[#allocation0]]
  $region22: #{tpu_custom_call.1} parent=0
    _
  %s5 = ssub.s32 1, %s3
  %s6 = scalar_select 0, %s5, %s3
  $region1: #{tpu_custom_call.1} parent=0
    #allocation2 [shape = 'u8[2048]{0}', space=vmem, size = 0x800, scoped, tag = 'input window, operand 0, single buffered']
    #allocation3 [shape = 's32[1]{0}', space=sflag, size = 0x4, scoped, tag = 'scoped memory for tpu_custom_call.1']
    #allocation4 [shape = 's32[1]{0}', space=sflag, size = 0x4, scoped, tag = 'scoped memory for tpu_custom_call.1']
    #allocation5 [shape = 'u8[2048]{0}', space=vmem, size = 0x800, scoped, tag = 'output window, operand 0, single buffered']
    %7 = vsyncpa [#allocation3], 0
    %8 = vsyncpa [#allocation4], 0
    // Predicated region
    $region2: #{tpu_custom_call.1} parent=1 // pred_check
      _
    $region3: #{tpu_custom_call.1} parent=1 // pred_check_branch
      %10 = sbr.rel (0) target = $region5
    $region4: #{tpu_custom_call.1} parent=1 // pred_region
      %s12 = ssub.s32 64, 64
      %13 = vsyncadd [#allocation3], %s12
      %s14 = sshll.u32 [#allocation2], 4
      %s15 = int_to_ptr.vmem [resolvable:$true] %s14
      %20 = dma.hbm_to_vmem [thread:$0]  %s0, 64, %s15, [#allocation3], 32, 32, 2
    $region5: #{tpu_custom_call.1} parent=1 // pred_fallthru
      _
    // Predicated region
    $region6: #{tpu_custom_call.1} parent=1 // pred_check
      _
    $region7: #{tpu_custom_call.1} parent=1 // pred_check_branch
      %22 = sbr.rel (0) target = $region9
    $region8: #{tpu_custom_call.1} parent=1 // pred_region
      _
    $region9: #{tpu_custom_call.1} parent=1 // pred_fallthru
      _
    // Predicated region
    $region10: #{tpu_custom_call.1} parent=1 // pred_check
      _
    $region11: #{tpu_custom_call.1} parent=1 // pred_check_branch
      %24 = sbr.rel (0) target = $region13
    $region12: #{tpu_custom_call.1} parent=1 // pred_region
      %25 = dma.done [#allocation3], 64
    $region13: #{tpu_custom_call.1} parent=1 // pred_fallthru
      _
    %v26 = vld [vmem:[#allocation2] sm:$0x3]
    %v27 = vld [vmem:[#allocation2 + $0x2] sm:$0x3]
    %v28 = vld [vmem:[%s1] sm:$0x3]
    %v29 = vadd.f32 %v26, %v28
    %v30 = vadd.f32 %v27, %v28
    %31 = vst [vmem:[#allocation5] sm:$0x3] %v29
    %32 = vst [vmem:[#allocation5 + $0x2] sm:$0x3] %v30
    // Predicated region
    $region14: #{tpu_custom_call.1} parent=1 // pred_check
      _
    $region15: #{tpu_custom_call.1} parent=1 // pred_check_branch
      %34 = sbr.rel (0) target = $region17
    $region16: #{tpu_custom_call.1} parent=1 // pred_region
      %s36 = ssub.s32 64, 64
      %37 = vsyncadd [#allocation4], %s36
      %s38 = sshll.u32 [#allocation5], 4
      %s39 = int_to_ptr.vmem [resolvable:$true] %s38
      %44 = dma.vmem_to_hbm [thread:$0]  %s39, 64, %s2, [#allocation4], 32, 32, 2
    $region17: #{tpu_custom_call.1} parent=1 // pred_fallthru
      _
    // Predicated region
    $region18: #{tpu_custom_call.1} parent=1 // pred_check
      _
    $region19: #{tpu_custom_call.1} parent=1 // pred_check_branch
      %46 = sbr.rel (0) target = $region21
    $region20: #{tpu_custom_call.1} parent=1 // pred_region
      %47 = dma.done [#allocation4], 64
    $region21: #{tpu_custom_call.1} parent=1 // pred_fallthru
      _
    %48 = vsyncpa [#allocation3], 1
    %49 = vsyncpa [#allocation4], 1

</llo_original>
